<compile_context>
chip_gen: v5e
topology: v5e:2x2
jax: 0.10.0
libtpu: 0.0.40
codegen_flags: <defaults>
</compile_context>

<pallas_src>
import functools

import jax
import jax.numpy as jnp
from jax import lax
from jax.experimental import pallas as pl
from jax.experimental.pallas import tpu as pltpu


def _round_up(v, m):
    return ((v + m - 1) // m) * m


def gnn_mlp_kernel(x_ref, w1_ref, b1_ref, w2_ref, b2_ref, o_ref, *,
                   elementwise_bf16):
    # In-kernel cast (VPU, hidden under the DMA) -- avoids a wrapper-side
    # full-HBM pass over x.
    x = x_ref[...].astype(jnp.bfloat16)
    # fc1 on the MXU: (tm, in) bf16 @ (in, hidden) bf16 -> f32 accumulate.
    h = jnp.dot(x, w1_ref[...], preferred_element_type=jnp.float32)
    if elementwise_bf16:
        # bf16 VALU packs 2 elems/lane -> halves the elementwise op count
        # (use on v6e/v7x; keep False on v5e which has no bf16 VPU).
        hb = jnp.maximum(h.astype(jnp.bfloat16) + b1_ref[...].astype(jnp.bfloat16),
                         0.0)
    else:
        hb = jnp.maximum(h + b1_ref[...], 0.0).astype(jnp.bfloat16)
    # fc2 computed transposed so the result lands lane-dense as (1, tm):
    #   y_t[o, m] = sum_k w2[o, k] * h[m, k]
    yt = lax.dot_general(
        w2_ref[...], hb,
        dimension_numbers=(((1,), (1,)), ((), ())),
        preferred_element_type=jnp.float32)           # (1, tm) f32
    o_ref[...] = (yt + b2_ref[...]).astype(o_ref.dtype)


def gnn_forward(x, w1, b1, w2, b2, *, tm_target=4096, elementwise_bf16=False):
    """x: (n, in_dim) f32; w1: (in_dim, hidden); b1: (1, hidden);
       w2: (out_dim, hidden)  [PyTorch fc2.weight layout]; b2: (1, out_dim)."""
    n, in_dim = x.shape
    hidden_dim = w1.shape[1]
    out_dim = w2.shape[0]
    assert out_dim == 1, "kernel is specialized to output_dim == 1"

    # Node tile: as large as the target allows, but keep grid_n >= 2 when n
    # permits so the ("parallel",) axis can be sharded across both v7x TCs.
    # tm must be a multiple of 128 for the lane-dense (1, tm) output block.
    tm = min(_round_up(tm_target, 128),
             max(128, _round_up(pl.cdiv(n, 2), 128)))
    grid_n = pl.cdiv(n, tm)

    w1_b = w1.astype(jnp.bfloat16)
    w2_b = w2.astype(jnp.bfloat16)
    b1_f = b1.astype(jnp.float32)
    b2_f = b2.astype(jnp.float32)

    cost = pl.CostEstimate(
        flops=2 * n * (in_dim * hidden_dim + hidden_dim * out_dim),
        transcendentals=0,
        bytes_accessed=(n * in_dim * 4 + n * out_dim * 4
                        + (in_dim + out_dim) * hidden_dim * 2
                        + (hidden_dim + out_dim) * 4),
    )

    kernel = functools.partial(gnn_mlp_kernel,
                               elementwise_bf16=elementwise_bf16)

    out_t = pl.pallas_call(
        kernel,
        out_shape=jax.ShapeDtypeStruct((1, n), jnp.float32),
        grid_spec=pltpu.PrefetchScalarGridSpec(
            num_scalar_prefetch=0,
            grid=(grid_n,),
            in_specs=[
                # x: tiled over the node dimension; ragged last block is
                # masked by Pallas (no wrapper-side pad pass).
                pl.BlockSpec((tm, in_dim), lambda i: (i, 0)),
                # weights / biases: full, grid-invariant blocks (DMA'd once).
                pl.BlockSpec((in_dim, hidden_dim), lambda i: (0, 0)),
                pl.BlockSpec((1, hidden_dim), lambda i: (0, 0)),
                pl.BlockSpec((out_dim, hidden_dim), lambda i: (0, 0)),
                pl.BlockSpec((1, out_dim), lambda i: (0, 0)),
            ],
            # lane-dense (1, tm) output block per grid step
            out_specs=pl.BlockSpec((1, tm), lambda i: (0, i)),
        ),
        compiler_params=pltpu.CompilerParams(
            dimension_semantics=("parallel",),
        ),
        cost_estimate=cost,
    )(x.astype(jnp.float32), w1_b, b1_f, w2_b, b2_f)

    # (1, n) lane-dense slab -> (n, 1) node-major output.
    return out_t.reshape(n, 1)


def init_params(key, input_dim=32, hidden_dim=64, output_dim=1):
    # Deterministic PyTorch-style uniform(-1/sqrt(fan_in), 1/sqrt(fan_in)) init.
    k1, k2, k3, k4 = jax.random.split(key, 4)
    bound1 = 1.0 / float(input_dim) ** 0.5
    bound2 = 1.0 / float(hidden_dim) ** 0.5
    w1 = jax.random.uniform(k1, (input_dim, hidden_dim), jnp.float32,
                            -bound1, bound1)
    b1 = jax.random.uniform(k2, (1, hidden_dim), jnp.float32, -bound1, bound1)
    # fc2 weight kept in PyTorch's native (out_features, in_features) layout.
    w2 = jax.random.uniform(k3, (output_dim, hidden_dim), jnp.float32,
                            -bound2, bound2)
    b2 = jax.random.uniform(k4, (1, output_dim), jnp.float32, -bound2, bound2)
    return w1, b1, w2, b2


def reference_forward_f32(x, w1, b1, w2, b2):
    h = jnp.maximum(x @ w1 + b1, 0.0)
    return h @ w2.T + b2


def reference_forward_mixed(x, w1, b1, w2, b2):
    # Mirrors the default kernel precision: bf16 MXU operands, f32 accumulate,
    # f32 bias/ReLU.
    xb = x.astype(jnp.bfloat16)
    w1b = w1.astype(jnp.bfloat16)
    w2b = w2.astype(jnp.bfloat16)
    h = jnp.dot(xb, w1b, preferred_element_type=jnp.float32) + b1
    h = jnp.maximum(h, 0.0)
    y = jnp.dot(h.astype(jnp.bfloat16), w2b.T,
                preferred_element_type=jnp.float32)
    return y + b2


if __name__ == "__main__":
    input_dim, hidden_dim, output_dim = 32, 64, 1
    num_nodes = 300  # not a tile multiple: exercises the masked ragged block

    key = jax.random.PRNGKey(0)
    kx, kp = jax.random.split(key)
    x = jax.random.normal(kx, (num_nodes, input_dim), jnp.float32)
    w1, b1, w2, b2 = init_params(kp, input_dim, hidden_dim, output_dim)

    # Default path (f32 elementwise): tm clamps to 256 here -> grid of 2.
    out = gnn_forward(x, w1, b1, w2, b2)
    out = jax.block_until_ready(out)
    assert out.shape == (num_nodes, output_dim)

    ref_mixed = reference_forward_mixed(x, w1, b1, w2, b2)
    ref_f32 = reference_forward_f32(x, w1, b1, w2, b2)
    assert jnp.allclose(out, ref_mixed, atol=1e-4, rtol=1e-4), \
        "mismatch vs mixed-precision reference"
    assert jnp.allclose(out, ref_f32, atol=2e-2, rtol=2e-2), \
        "mismatch vs f32 reference"

    # Optional v6e/v7x path: bf16 bias+ReLU (looser numerics by design).
    out_bf16_ew = gnn_forward(x, w1, b1, w2, b2, elementwise_bf16=True)
    out_bf16_ew = jax.block_until_ready(out_bf16_ew)
    assert out_bf16_ew.shape == (num_nodes, output_dim)
    assert jnp.allclose(out_bf16_ew, ref_f32, atol=1e-1, rtol=1e-1), \
        "mismatch vs f32 reference (bf16 elementwise path)"

    print("KERNEL_OK")
</pallas_src>

<mosaic_0001>
module attributes {stable_mosaic.version = 11 : i64} {
  func.func @gnn_mlp_kernel(%arg0: i32, %arg1: memref<256x32xf32, #tpu.memory_space<vmem>>, %arg2: memref<32x64xbf16, #tpu.memory_space<vmem>>, %arg3: memref<1x64xf32, #tpu.memory_space<vmem>>, %arg4: memref<1x64xbf16, #tpu.memory_space<vmem>>, %arg5: memref<1x1xf32, #tpu.memory_space<vmem>>, %arg6: memref<1x256xf32, #tpu.memory_space<vmem>>) attributes {dimension_semantics = [#tpu.dimension_semantics<parallel>], iteration_bounds = array<i64: 2>, scalar_prefetch = 0 : i64, scratch_operands = 0 : i64, tpu.core_type = #tpu.core_type<tc>, window_params = [{transform_indices = @transform_0, window_bounds = array<i64: 256, 32>}, {pipeline_mode = #tpu.pipeline_mode<synchronous>, transform_indices = @transform_1, window_bounds = array<i64: 32, 64>}, {pipeline_mode = #tpu.pipeline_mode<synchronous>, transform_indices = @transform_2, window_bounds = array<i64: 1, 64>}, {pipeline_mode = #tpu.pipeline_mode<synchronous>, transform_indices = @transform_3, window_bounds = array<i64: 1, 64>}, {pipeline_mode = #tpu.pipeline_mode<synchronous>, transform_indices = @transform_4, window_bounds = array<i64: 1, 1>}, {transform_indices = @transform_5, window_bounds = array<i64: 1, 256>}]} {
    %c0 = arith.constant 0 : index
    %c0_0 = arith.constant 0 : index
    %0 = vector.load %arg1[%c0, %c0_0] : memref<256x32xf32, #tpu.memory_space<vmem>>, vector<256x32xf32>
    %1 = arith.truncf %0 : vector<256x32xf32> to vector<256x32xbf16>
    %c0_1 = arith.constant 0 : index
    %c0_2 = arith.constant 0 : index
    %2 = vector.load %arg2[%c0_1, %c0_2] : memref<32x64xbf16, #tpu.memory_space<vmem>>, vector<32x64xbf16>
    %cst = arith.constant dense<0.000000e+00> : vector<256x64xf32>
    %3 = tpu.matmul %1, %2, %cst {dimension_numbers = #tpu.dot_dimension_numbers<[1], [0], [0], [1], [0, 0, 1, 1], [], []>} : vector<256x32xbf16>, vector<32x64xbf16>, vector<256x64xf32> -> vector<256x64xf32>
    %c0_3 = arith.constant 0 : index
    %c0_4 = arith.constant 0 : index
    %4 = vector.load %arg3[%c0_3, %c0_4] : memref<1x64xf32, #tpu.memory_space<vmem>>, vector<1x64xf32>
    %5 = vector.broadcast %4 : vector<1x64xf32> to vector<256x64xf32>
    %6 = arith.addf %3, %5 : vector<256x64xf32>
    %cst_5 = arith.constant 0.000000e+00 : f32
    %7 = vector.broadcast %cst_5 : f32 to vector<256x64xf32>
    %8 = arith.maximumf %6, %7 : vector<256x64xf32>
    %9 = arith.truncf %8 : vector<256x64xf32> to vector<256x64xbf16>
    %c0_6 = arith.constant 0 : index
    %c0_7 = arith.constant 0 : index
    %10 = vector.load %arg4[%c0_6, %c0_7] : memref<1x64xbf16, #tpu.memory_space<vmem>>, vector<1x64xbf16>
    %cst_8 = arith.constant dense<0.000000e+00> : vector<1x256xf32>
    %11 = tpu.matmul %10, %9, %cst_8 {dimension_numbers = #tpu.dot_dimension_numbers<[1], [1], [0], [0], [0, 0, 1, 0], [], []>} : vector<1x64xbf16>, vector<256x64xbf16>, vector<1x256xf32> -> vector<1x256xf32>
    %c0_9 = arith.constant 0 : index
    %c0_10 = arith.constant 0 : index
    %12 = vector.load %arg5[%c0_9, %c0_10] : memref<1x1xf32, #tpu.memory_space<vmem>>, vector<1x1xf32>
    %13 = vector.broadcast %12 : vector<1x1xf32> to vector<1x256xf32>
    %14 = arith.addf %11, %13 : vector<1x256xf32>
    %c0_11 = arith.constant 0 : index
    %c0_12 = arith.constant 0 : index
    %15 = vector.load %arg6[%c0_11, %c0_12] : memref<1x256xf32, #tpu.memory_space<vmem>>, vector<1x256xf32>
    tpu.vector_store %arg6[%c0_11, %c0_12], %14 {strides = array<i32>} : memref<1x256xf32, #tpu.memory_space<vmem>>, vector<1x256xf32>,
    return
  }
  func.func @transform_0(%arg0: i32) -> (i32, i32) {
    %c0_i32 = arith.constant 0 : i32
    %c0_i32_0 = arith.constant 0 : i32
    return %arg0, %c0_i32 : i32, i32
  }
  func.func @transform_1(%arg0: i32) -> (i32, i32) {
    %c0_i32 = arith.constant 0 : i32
    %c0_i32_0 = arith.constant 0 : i32
    %c0_i32_1 = arith.constant 0 : i32
    return %c0_i32, %c0_i32_0 : i32, i32
  }
  func.func @transform_2(%arg0: i32) -> (i32, i32) {
    %c0_i32 = arith.constant 0 : i32
    %c0_i32_0 = arith.constant 0 : i32
    %c0_i32_1 = arith.constant 0 : i32
    return %c0_i32, %c0_i32_0 : i32, i32
  }
  func.func @transform_3(%arg0: i32) -> (i32, i32) {
    %c0_i32 = arith.constant 0 : i32
    %c0_i32_0 = arith.constant 0 : i32
    %c0_i32_1 = arith.constant 0 : i32
    return %c0_i32, %c0_i32_0 : i32, i32
  }
  func.func @transform_4(%arg0: i32) -> (i32, i32) {
    %c0_i32 = arith.constant 0 : i32
    %c0_i32_0 = arith.constant 0 : i32
    %c0_i32_1 = arith.constant 0 : i32
    return %c0_i32, %c0_i32_0 : i32, i32
  }
  func.func @transform_5(%arg0: i32) -> (i32, i32) {
    %c0_i32 = arith.constant 0 : i32
    %c0_i32_0 = arith.constant 0 : i32
    return %c0_i32, %arg0 : i32, i32
  }
}

</mosaic_0001>

<llo_original>
// kernel: tpu_custom_call.1
$region0: #{tpu_custom_call.1}
  #allocation0 [shape = 'u32[]', space=smem, size = 0x4, offset = 0x4, fixed_abs, tag = 'smem constant byte address 0x4 - core index']
  #allocation1 [shape = 'u32[72,128]{1,0:T(1,128)}', space=vmem, size = 0x9000, scoped, tag = 'internal scratch']
  #allocation2 [shape = 'f32[1,1]{1,0:T(1,128)S(1)}', space=vmem, size = 0x200, scoped, tag = 'scoped memory for tpu_custom_call.1']
  %s0 = inlined_call_operand.vmem [shape: f32[300,32], index: 0, kind: input, shape index: {}]
  %s1 = inlined_call_operand.vmem [shape: bf16[32,64], index: 1, kind: input, shape index: {}]
  %s2 = inlined_call_operand.vmem [shape: f32[1,64], index: 2, kind: input, shape index: {}]
  %s3 = inlined_call_operand.vmem [shape: bf16[1,64], index: 3, kind: input, shape index: {}]
  %s4 = inlined_call_operand.<no memory space> [shape: f32[1,1], index: 4, kind: input, shape index: {}]
  %s5 = inlined_call_operand.hbm [shape: f32[1,300], index: 5, kind: output, shape index: {}]
  %s6 = sld [smem:[#allocation0]]
  $region53: #{tpu_custom_call.1} parent=0
    _
  %s8 = ssub.s32 1, %s6
  %s9 = scalar_select 0, %s8, %s6
  %v10 = vstv %s4
  %11 = vst [vmem:[#allocation2] sm:$0x1] %v10
  $region1: #{tpu_custom_call.1} parent=0
    #allocation3 [shape = 'u8[2048]{0}', space=vmem, size = 0x800, scoped, tag = 'output window, operand 0']
    #allocation4 [shape = 's32[2]{0}', space=sflag, size = 0x8, scoped, tag = 'scoped memory for tpu_custom_call.1']
    %12 = vsyncpa [#allocation4], 0
    %s13 = scalar_lea.sflag [#allocation4], 1
    %14 = vsyncpa %s13, 0
    loop: start=0, step=1, limit=4
    $region2: #{tpu_custom_call.1} parent=1 // loop_pre_header
      _
    $region3: #{tpu_custom_call.1} parent=1 // loop_header
      %s16 = sphi 0, %s20
      %p17 = scmp.ge.s32.totalorder %s16, 4
      %s26 = sphi 0, %s28
      %s29 = sphi 0, %s26
      %s30 = sphi 0, %s29
      %s46 = sphi 0, %s30
      %s50 = sphi 0, %s50
      %s52 = sphi 0, %s50
      %s53 = sphi 0, %s52
      %s67 = sphi 0, %s53
      %s71 = sphi 0, %s71
      %s73 = sphi 0, %s71
      %s74 = sphi 0, %s73
      %s88 = sphi 0, %s74
      %s92 = sphi 0, %s92
      %s94 = sphi 0, %s92
      %s95 = sphi 0, %s94
      %s109 = sphi 0, %s95
      %s113 = sphi 0, %s113
      %s115 = sphi 0, %s113
      %s116 = sphi 0, %s115
      %s130 = sphi 0, %s116
      %s136 = sphi 0, %s138
      %s139 = sphi 0, %s136
      %s140 = sphi 0, %s139
      %s156 = sphi 0, %s140
    $region4: #{tpu_custom_call.1} parent=1 // loop_header_branch
      %19 = sbr.rel (%p17) target = $region8
    $region5: #{tpu_custom_call.1} parent=1 // loop_body
      %s21 = ssub.s32 %s16, 1
      %s22 = ssub.s32 %s16, 2
      %s23 = sadd.s32 %s16, 1
      %s24 = ssub.s32 %s16, %s23
      %p25 = scmp.eq.s32.totalorder %s24, 0
      %s27 = sadd.s32 %s26, 1
      %s28 = scalar_select %p25, %s26, %s27
      %p31 = pneg %p25
      %p32 = scmp.eq.s32.totalorder %s16, 1
      %p33 = por %p31, %p32
      %p34 = scmp.ne.s32.totalorder %s26, %s29
      %p35 = scmp.eq.s32.totalorder %s16, 0
      %p36 = por %p34, %p35
      %p37 = scmp.ne.s32.totalorder %s26, %s29
      %p38 = scmp.eq.s32.totalorder %s21, 1
      %p39 = por %p37, %p38
      %p40 = scmp.ne.s32.totalorder %s29, %s30
      %p41 = scmp.eq.s32.totalorder %s21, 0
      %p42 = por %p40, %p41
      %p43 = scmp.ne.s32.totalorder %s29, %s30
      %p44 = scmp.eq.s32.totalorder %s22, 1
      %p45 = por %p43, %p44
      %p47 = scmp.ne.s32.totalorder %s30, %s46
      %p48 = scmp.eq.s32.totalorder %s22, 0
      %p49 = por %p47, %p48
      %s51 = sadd.s32 %s50, 1
      %p54 = scmp.eq.s32.totalorder %s16, 1
      %p55 = scmp.ne.s32.totalorder %s50, %s52
      %p56 = scmp.eq.s32.totalorder %s16, 0
      %p57 = por %p55, %p56
      %p58 = scmp.ne.s32.totalorder %s50, %s52
      %p59 = scmp.eq.s32.totalorder %s21, 1
      %p60 = por %p58, %p59
      %p61 = scmp.ne.s32.totalorder %s52, %s53
      %p62 = scmp.eq.s32.totalorder %s21, 0
      %p63 = por %p61, %p62
      %p64 = scmp.ne.s32.totalorder %s52, %s53
      %p65 = scmp.eq.s32.totalorder %s22, 1
      %p66 = por %p64, %p65
      %p68 = scmp.ne.s32.totalorder %s53, %s67
      %p69 = scmp.eq.s32.totalorder %s22, 0
      %p70 = por %p68, %p69
      %s72 = sadd.s32 %s71, 1
      %p75 = scmp.eq.s32.totalorder %s16, 1
      %p76 = scmp.ne.s32.totalorder %s71, %s73
      %p77 = scmp.eq.s32.totalorder %s16, 0
      %p78 = por %p76, %p77
      %p79 = scmp.ne.s32.totalorder %s71, %s73
      %p80 = scmp.eq.s32.totalorder %s21, 1
      %p81 = por %p79, %p80
      %p82 = scmp.ne.s32.totalorder %s73, %s74
      %p83 = scmp.eq.s32.totalorder %s21, 0
      %p84 = por %p82, %p83
      %p85 = scmp.ne.s32.totalorder %s73, %s74
      %p86 = scmp.eq.s32.totalorder %s22, 1
      %p87 = por %p85, %p86
      %p89 = scmp.ne.s32.totalorder %s74, %s88
      %p90 = scmp.eq.s32.totalorder %s22, 0
      %p91 = por %p89, %p90
      %s93 = sadd.s32 %s92, 1
      %p96 = scmp.eq.s32.totalorder %s16, 1
      %p97 = scmp.ne.s32.totalorder %s92, %s94
      %p98 = scmp.eq.s32.totalorder %s16, 0
      %p99 = por %p97, %p98
      %p100 = scmp.ne.s32.totalorder %s92, %s94
      %p101 = scmp.eq.s32.totalorder %s21, 1
      %p102 = por %p100, %p101
      %p103 = scmp.ne.s32.totalorder %s94, %s95
      %p104 = scmp.eq.s32.totalorder %s21, 0
      %p105 = por %p103, %p104
      %p106 = scmp.ne.s32.totalorder %s94, %s95
      %p107 = scmp.eq.s32.totalorder %s22, 1
      %p108 = por %p106, %p107
      %p110 = scmp.ne.s32.totalorder %s95, %s109
      %p111 = scmp.eq.s32.totalorder %s22, 0
      %p112 = por %p110, %p111
      %s114 = sadd.s32 %s113, 1
      %p117 = scmp.eq.s32.totalorder %s16, 1
      %p118 = scmp.ne.s32.totalorder %s113, %s115
      %p119 = scmp.eq.s32.totalorder %s16, 0
      %p120 = por %p118, %p119
      %p121 = scmp.ne.s32.totalorder %s113, %s115
      %p122 = scmp.eq.s32.totalorder %s21, 1
      %p123 = por %p121, %p122
      %p124 = scmp.ne.s32.totalorder %s115, %s116
      %p125 = scmp.eq.s32.totalorder %s21, 0
      %p126 = por %p124, %p125
      %p127 = scmp.ne.s32.totalorder %s115, %s116
      %p128 = scmp.eq.s32.totalorder %s22, 1
      %p129 = por %p127, %p128
      %p131 = scmp.ne.s32.totalorder %s116, %s130
      %p132 = scmp.eq.s32.totalorder %s22, 0
      %p133 = por %p131, %p132
      %s134 = ssub.s32 %s16, %s23
      %p135 = scmp.eq.s32.totalorder %s134, 0
      %s137 = sadd.s32 %s136, 1
      %s138 = scalar_select %p135, %s136, %s137
      %p141 = pneg %p135
      %p142 = scmp.eq.s32.totalorder %s16, 1
      %p143 = por %p141, %p142
      %p144 = scmp.ne.s32.totalorder %s136, %s139
      %p145 = scmp.eq.s32.totalorder %s16, 0
      %p146 = por %p144, %p145
      %p147 = scmp.ne.s32.totalorder %s136, %s139
      %p148 = scmp.eq.s32.totalorder %s21, 1
      %p149 = por %p147, %p148
      %p150 = scmp.ne.s32.totalorder %s139, %s140
      %p151 = scmp.eq.s32.totalorder %s21, 0
      %p152 = por %p150, %p151
      %p153 = scmp.ne.s32.totalorder %s139, %s140
      %p154 = scmp.eq.s32.totalorder %s22, 1
      %p155 = por %p153, %p154
      %p157 = scmp.ne.s32.totalorder %s140, %s156
      %p158 = scmp.eq.s32.totalorder %s22, 0
      %p159 = por %p157, %p158
      %p160 = scmp.le.s32.totalorder 1, %s16
      %p161 = scmp.lt.s32.totalorder %s16, 3
      %p162 = pnand %p160, %p161
      %p163 = pneg %p162
      // Predicated region
      $region9: #{tpu_custom_call.1} parent=5 // pred_check
        _
      $region10: #{tpu_custom_call.1} parent=5 // pred_check_branch
        %165 = sbr.rel (%p162) target = $region12
      $region11: #{tpu_custom_call.1} parent=5 // pred_region
        %s166 = ssub.s32 %s16, 1
        // Predicated region
        $region13: #{tpu_custom_call.1} parent=11 // pred_check
          %p167 = pneg %p63
        $region14: #{tpu_custom_call.1} parent=11 // pred_check_branch
          %169 = sbr.rel (%p167) target = $region16
        $region15: #{tpu_custom_call.1} parent=11 // pred_region
          _
        $region16: #{tpu_custom_call.1} parent=11 // pred_fallthru
          _
        // Predicated region
        $region17: #{tpu_custom_call.1} parent=11 // pred_check
          %p170 = pneg %p84
        $region18: #{tpu_custom_call.1} parent=11 // pred_check_branch
          %172 = sbr.rel (%p170) target = $region20
        $region19: #{tpu_custom_call.1} parent=11 // pred_region
          _
        $region20: #{tpu_custom_call.1} parent=11 // pred_fallthru
          _
        // Predicated region
        $region21: #{tpu_custom_call.1} parent=11 // pred_check
          %p173 = pneg %p105
        $region22: #{tpu_custom_call.1} parent=11 // pred_check_branch
          %175 = sbr.rel (%p173) target = $region24
        $region23: #{tpu_custom_call.1} parent=11 // pred_region
          _
        $region24: #{tpu_custom_call.1} parent=11 // pred_fallthru
          _
        // Predicated region
        $region25: #{tpu_custom_call.1} parent=11 // pred_check
          %p176 = pneg %p126
        $region26: #{tpu_custom_call.1} parent=11 // pred_check_branch
          %178 = sbr.rel (%p176) target = $region28
        $region27: #{tpu_custom_call.1} parent=11 // pred_region
          _
        $region28: #{tpu_custom_call.1} parent=11 // pred_fallthru
          _
      $region12: #{tpu_custom_call.1} parent=5 // pred_fallthru
        _
      %p179 = scmp.lt.s32.totalorder %s16, 2
      // Predicated region
      $region29: #{tpu_custom_call.1} parent=5 // pred_check
        %p180 = pneg %p179
      $region30: #{tpu_custom_call.1} parent=5 // pred_check_branch
        %182 = sbr.rel (%p180) target = $region32
      $region31: #{tpu_custom_call.1} parent=5 // pred_region
        // Predicated region
        $region33: #{tpu_custom_call.1} parent=31 // pred_check
          %p183 = pneg %p36
        $region34: #{tpu_custom_call.1} parent=31 // pred_check_branch
          %185 = sbr.rel (%p183) target = $region36
        $region35: #{tpu_custom_call.1} parent=31 // pred_region
          %s186 = smul.u32 32, %s16
          %s187 = ssub.s32 38, %s186
          %p188 = scmp.lt.s32.totalorder %s187, 32
          %s189 = scalar_select %p188, %s187, 32
          %s190 = smul.u32 8, %s189
          %p191 = scmp.lt.s32.totalorder %s186, 37
          %s192 = scalar_select %p191, %s186, 37
          %s193 = smul.addr %s192, 8
          %s194 = scalar_lea.vmem %s0, %s193
          %s195 = smul.u32 32, %s16
          %s196 = ssub.s32 38, %s195
          %p197 = scmp.lt.s32.totalorder %s196, 32
          %s198 = scalar_select %p197, %s196, 32
          %s199 = smul.u32 8, %s198
        $region36: #{tpu_custom_call.1} parent=31 // pred_fallthru
          _
      $region32: #{tpu_custom_call.1} parent=5 // pred_fallthru
        _
      %p200 = scmp.le.s32.totalorder 1, %s16
      %p201 = scmp.lt.s32.totalorder %s16, 3
      %p202 = pnand %p200, %p201
      %p203 = pneg %p202
      // Predicated region
      $region37: #{tpu_custom_call.1} parent=5 // pred_check
        _
      $region38: #{tpu_custom_call.1} parent=5 // pred_check_branch
        %205 = sbr.rel (%p202) target = $region40
      $region39: #{tpu_custom_call.1} parent=5 // pred_region
        %s206 = ssub.s32 %s16, 1
        %s207 = smul.u32 32, %s21
        %s208 = ssub.s32 38, %s207
        %p209 = scmp.lt.s32.totalorder %s208, 32
        %s210 = scalar_select %p209, %s208, 32
        %s211 = smul.u32 8, %s210
        %p212 = scmp.lt.s32.totalorder %s207, 37
        %s213 = scalar_select %p212, %s207, 37
        %s214 = smul.addr %s213, 8
        %s215 = scalar_lea.vmem %s0, %s214
        %p216 = pneg %p42
        %p217 = pneg %p39
        %p218 = pneg %p63
        %p219 = pneg %p60
        %p220 = pneg %p84
        %p221 = pneg %p81
        %p222 = pneg %p105
        %p223 = pneg %p102
        %p224 = pneg %p126
        %p225 = pneg %p123
        %p226 = pneg %p152
        %p227 = pneg %p149
        %s228 = sand.u32 %s139, 1
        %s229 = scalar_lea.sflag [#allocation4], %s228
        %s230 = sand.u32 %s139, 1
        %s231 = smul.addr %s230, 2
        %s232 = scalar_lea.vmem [#allocation3], %s231
        %s233 = smul.u32 32, %s21
        %s234 = ssub.s32 38, %s233
        %p235 = scmp.lt.s32.totalorder %s234, 32
        %s236 = scalar_select %p235, %s234, 32
        %s237 = smul.u32 8, %s236
        %p238 = scmp.lt.s32.totalorder %s233, 37
        %s239 = scalar_select %p238, %s233, 37
        %s240 = smul.addr %s239, 8
        %s241 = scalar_lea.vmem %s0, %s240
        %s242 = smul.u32 32, %s21
        %s243 = ssub.s32 38, %s242
        %p244 = scmp.lt.s32.totalorder %s243, 32
        %s245 = scalar_select %p244, %s243, 32
        %s246 = smul.u32 8, %s245
        %s247 = smul.u32 2, %s21
        %s248 = ssub.s32 3, %s247
        %p249 = scmp.lt.s32.totalorder %s248, 2
        %s250 = scalar_select %p249, %s248, 2
        %v252 = vld [vmem:[%s241] sm:$0xff]
        %v253 = vld [vmem:[%s241 + $0x8] sm:$0xff]
        %v254 = vld [vmem:[%s241 + $0x10] sm:$0xff]
        %v255 = vld [vmem:[%s241 + $0x18] sm:$0xff]
        %v256 = vld [vmem:[%s241 + $0x20] sm:$0xff]
        %v257 = vld [vmem:[%s241 + $0x28] sm:$0xff]
        %v258 = vld [vmem:[%s241 + $0x30] sm:$0xff]
        %v259 = vld [vmem:[%s241 + $0x38] sm:$0xff]
        %v260 = vld [vmem:[%s241 + $0x40] sm:$0xff]
        %v261 = vld [vmem:[%s241 + $0x48] sm:$0xff]
        %v262 = vld [vmem:[%s241 + $0x50] sm:$0xff]
        %v263 = vld [vmem:[%s241 + $0x58] sm:$0xff]
        %v264 = vld [vmem:[%s241 + $0x60] sm:$0xff]
        %v265 = vld [vmem:[%s241 + $0x68] sm:$0xff]
        %v266 = vld [vmem:[%s241 + $0x70] sm:$0xff]
        %v267 = vld [vmem:[%s241 + $0x78] sm:$0xff]
        %v268 = vld [vmem:[%s241 + $0x80] sm:$0xff]
        %v269 = vld [vmem:[%s241 + $0x88] sm:$0xff]
        %v270 = vld [vmem:[%s241 + $0x90] sm:$0xff]
        %v271 = vld [vmem:[%s241 + $0x98] sm:$0xff]
        %v272 = vld [vmem:[%s241 + $0xa0] sm:$0xff]
        %v273 = vld [vmem:[%s241 + $0xa8] sm:$0xff]
        %v274 = vld [vmem:[%s241 + $0xb0] sm:$0xff]
        %v275 = vld [vmem:[%s241 + $0xb8] sm:$0xff]
        %v276 = vld [vmem:[%s241 + $0xc0] sm:$0xff]
        %v277 = vld [vmem:[%s241 + $0xc8] sm:$0xff]
        %v278 = vld [vmem:[%s241 + $0xd0] sm:$0xff]
        %v279 = vld [vmem:[%s241 + $0xd8] sm:$0xff]
        %v280 = vld [vmem:[%s241 + $0xe0] sm:$0xff]
        %v281 = vld [vmem:[%s241 + $0xe8] sm:$0xff]
        %v282 = vld [vmem:[%s241 + $0xf0] sm:$0xff]
        %v283 = vld [vmem:[%s241 + $0xf8] sm:$0xff]
        %v284 = vpack.c.bf16 %v253, %v252
        %v285 = vpack.c.bf16 %v255, %v254
        %v286 = vpack.c.bf16 %v257, %v256
        %v287 = vpack.c.bf16 %v259, %v258
        %v288 = vpack.c.bf16 %v261, %v260
        %v289 = vpack.c.bf16 %v263, %v262
        %v290 = vpack.c.bf16 %v265, %v264
        %v291 = vpack.c.bf16 %v267, %v266
        %v292 = vpack.c.bf16 %v269, %v268
        %v293 = vpack.c.bf16 %v271, %v270
        %v294 = vpack.c.bf16 %v273, %v272
        %v295 = vpack.c.bf16 %v275, %v274
        %v296 = vpack.c.bf16 %v277, %v276
        %v297 = vpack.c.bf16 %v279, %v278
        %v298 = vpack.c.bf16 %v281, %v280
        %v299 = vpack.c.bf16 %v283, %v282
        %v300 = vld [vmem:[%s1] sm:$0xf]
        %v301 = vld [vmem:[%s1 + $0x4] sm:$0xf]
        %v302 = vld [vmem:[%s1 + $0x8] sm:$0xf]
        %v303 = vld [vmem:[%s1 + $0xc] sm:$0xf]
        %v304 = vld [vmem:[%s2] sm:$0x1]
        %v306 = vperm.slane %v304, 0
        %v312 = vunpack.c.l.b16 %v300
        %v313 = vunpack.c.l.b16 %v301
        %v314 = vunpack.c.l.b16 %v302
        %v315 = vunpack.c.l.b16 %v303
        %v316 = vpack.c.b16 %v313, %v312
        %v317 = vpack.c.b16 %v315, %v314
        %vm320 = vcmask 261120
        %v322 = vsel %vm320, %v284, 0
        %v325 = vsel %vm320, %v285, 0
        %v328 = vsel %vm320, %v286, 0
        %v331 = vsel %vm320, %v287, 0
        %v334 = vsel %vm320, %v288, 0
        %v337 = vsel %vm320, %v289, 0
        %v340 = vsel %vm320, %v290, 0
        %v343 = vsel %vm320, %v291, 0
        %v346 = vsel %vm320, %v292, 0
        %v349 = vsel %vm320, %v293, 0
        %v352 = vsel %vm320, %v294, 0
        %v355 = vsel %vm320, %v295, 0
        %v358 = vsel %vm320, %v296, 0
        %v361 = vsel %vm320, %v297, 0
        %v364 = vsel %vm320, %v298, 0
        %v367 = vsel %vm320, %v299, 0
        %369 = vmatpush.bf16.msra.mxu0 0
        %370 = vmatpush.bf16.msra.mxu0 0
        %371 = vmatpush.bf16.msra.mxu0 0
        %372 = vmatpush.bf16.msra.mxu0 0
        %373 = vmatpush.bf16.msra.mxu0 0
        %374 = vmatpush.bf16.msra.mxu0 0
        %375 = vmatpush.bf16.msra.mxu0 %v317
        %376 = vmatpush.bf16.msra.mxu0 %v316
        %377 = vmatmul.bf16.gmra.mxu0 %v322
        %v378 = vpop.f32.mrf.mxu0
        %v379 = vadd.f32 %v306, %v378
        %v380 = vpop.f32.mrf.mxu0
        %v381 = vadd.f32 %v306, %v380
        %382 = vmatmul.bf16.gmra.mxu0 %v325
        %v383 = vpop.f32.mrf.mxu0
        %v384 = vadd.f32 %v306, %v383
        %v385 = vpop.f32.mrf.mxu0
        %v386 = vadd.f32 %v306, %v385
        %387 = vmatmul.bf16.gmra.mxu0 %v328
        %v388 = vpop.f32.mrf.mxu0
        %v389 = vadd.f32 %v306, %v388
        %v390 = vpop.f32.mrf.mxu0
        %v391 = vadd.f32 %v306, %v390
        %392 = vmatmul.bf16.gmra.mxu0 %v331
        %v393 = vpop.f32.mrf.mxu0
        %v394 = vadd.f32 %v306, %v393
        %v395 = vpop.f32.mrf.mxu0
        %v396 = vadd.f32 %v306, %v395
        %397 = vmatmul.bf16.gmra.mxu0 %v334
        %v398 = vpop.f32.mrf.mxu0
        %v399 = vadd.f32 %v306, %v398
        %v400 = vpop.f32.mrf.mxu0
        %v401 = vadd.f32 %v306, %v400
        %402 = vmatmul.bf16.gmra.mxu0 %v337
        %v403 = vpop.f32.mrf.mxu0
        %v404 = vadd.f32 %v306, %v403
        %v405 = vpop.f32.mrf.mxu0
        %v406 = vadd.f32 %v306, %v405
        %407 = vmatmul.bf16.gmra.mxu0 %v340
        %v408 = vpop.f32.mrf.mxu0
        %v409 = vadd.f32 %v306, %v408
        %v410 = vpop.f32.mrf.mxu0
        %v411 = vadd.f32 %v306, %v410
        %412 = vmatmul.bf16.gmra.mxu0 %v343
        %v413 = vpop.f32.mrf.mxu0
        %v414 = vadd.f32 %v306, %v413
        %v415 = vpop.f32.mrf.mxu0
        %v416 = vadd.f32 %v306, %v415
        %417 = vmatmul.bf16.gmra.mxu0 %v346
        %v418 = vpop.f32.mrf.mxu0
        %v419 = vadd.f32 %v306, %v418
        %v420 = vpop.f32.mrf.mxu0
        %v421 = vadd.f32 %v306, %v420
        %422 = vmatmul.bf16.gmra.mxu0 %v349
        %v423 = vpop.f32.mrf.mxu0
        %v424 = vadd.f32 %v306, %v423
        %v425 = vpop.f32.mrf.mxu0
        %v426 = vadd.f32 %v306, %v425
        %427 = vmatmul.bf16.gmra.mxu0 %v352
        %v428 = vpop.f32.mrf.mxu0
        %v429 = vadd.f32 %v306, %v428
        %v430 = vpop.f32.mrf.mxu0
        %v431 = vadd.f32 %v306, %v430
        %432 = vmatmul.bf16.gmra.mxu0 %v355
        %v433 = vpop.f32.mrf.mxu0
        %v434 = vadd.f32 %v306, %v433
        %v435 = vpop.f32.mrf.mxu0
        %v436 = vadd.f32 %v306, %v435
        %437 = vmatmul.bf16.gmra.mxu0 %v358
        %v438 = vpop.f32.mrf.mxu0
        %v439 = vadd.f32 %v306, %v438
        %v440 = vpop.f32.mrf.mxu0
        %v441 = vadd.f32 %v306, %v440
        %442 = vmatmul.bf16.gmra.mxu0 %v361
        %v443 = vpop.f32.mrf.mxu0
        %v444 = vadd.f32 %v306, %v443
        %v445 = vpop.f32.mrf.mxu0
        %v446 = vadd.f32 %v306, %v445
        %447 = vmatmul.bf16.gmra.mxu0 %v364
        %v448 = vpop.f32.mrf.mxu0
        %v449 = vadd.f32 %v306, %v448
        %v450 = vpop.f32.mrf.mxu0
        %v451 = vadd.f32 %v306, %v450
        %452 = vmatmul.bf16.gmra.mxu0 %v367
        %v453 = vpop.f32.mrf.mxu0
        %v454 = vadd.f32 %v306, %v453
        %v455 = vpop.f32.mrf.mxu0
        %v456 = vadd.f32 %v306, %v455
        %457 = vdwg.mxu0
        %v458 = vmax.f32 %v379, 0.0
        %v459 = vmax.f32 %v381, 0.0
        %v460 = vmax.f32 %v384, 0.0
        %v461 = vmax.f32 %v386, 0.0
        %v462 = vmax.f32 %v389, 0.0
        %v463 = vmax.f32 %v391, 0.0
        %v464 = vmax.f32 %v394, 0.0
        %v465 = vmax.f32 %v396, 0.0
        %v466 = vmax.f32 %v399, 0.0
        %v467 = vmax.f32 %v401, 0.0
        %v468 = vmax.f32 %v404, 0.0
        %v469 = vmax.f32 %v406, 0.0
        %v470 = vmax.f32 %v409, 0.0
        %v471 = vmax.f32 %v411, 0.0
        %v472 = vmax.f32 %v414, 0.0
        %v473 = vmax.f32 %v416, 0.0
        %v474 = vmax.f32 %v419, 0.0
        %v475 = vmax.f32 %v421, 0.0
        %v476 = vmax.f32 %v424, 0.0
        %v477 = vmax.f32 %v426, 0.0
        %v478 = vmax.f32 %v429, 0.0
        %v479 = vmax.f32 %v431, 0.0
        %v480 = vmax.f32 %v434, 0.0
        %v481 = vmax.f32 %v436, 0.0
        %v482 = vmax.f32 %v439, 0.0
        %v483 = vmax.f32 %v441, 0.0
        %v484 = vmax.f32 %v444, 0.0
        %v485 = vmax.f32 %v446, 0.0
        %v486 = vmax.f32 %v449, 0.0
        %v487 = vmax.f32 %v451, 0.0
        %v488 = vmax.f32 %v454, 0.0
        %v489 = vmax.f32 %v456, 0.0
        %v490 = vpack.c.bf16 %v459, %v458
        %v491 = vpack.c.bf16 %v461, %v460
        %v492 = vpack.c.bf16 %v463, %v462
        %v493 = vpack.c.bf16 %v465, %v464
        %v494 = vpack.c.bf16 %v467, %v466
        %v495 = vpack.c.bf16 %v469, %v468
        %v496 = vpack.c.bf16 %v471, %v470
        %v497 = vpack.c.bf16 %v473, %v472
        %v498 = vpack.c.bf16 %v475, %v474
        %v499 = vpack.c.bf16 %v477, %v476
        %v500 = vpack.c.bf16 %v479, %v478
        %v501 = vpack.c.bf16 %v481, %v480
        %v502 = vpack.c.bf16 %v483, %v482
        %v503 = vpack.c.bf16 %v485, %v484
        %v504 = vpack.c.bf16 %v487, %v486
        %v505 = vpack.c.bf16 %v489, %v488
        %v506 = vld [vmem:[%s3] sm:$0x1]
        %v507 = vld [vmem:[#allocation2] sm:$0x1]
        %509 = vset.pattern.permute.xlu0 0
        %510 = vperm.xlu0 %509, %v507
        %v511 = vpop.permute.xlu0 %510
        %v513 = vperm.slane %v511, 0
        %vm514 = vcmask 523264
        %v516 = vsel %vm514, %v506, 0
        %v519 = vsel %vm514, %v490, 0
        %v522 = vsel %vm514, %v491, 0
        %v525 = vsel %vm514, %v492, 0
        %v528 = vsel %vm514, %v493, 0
        %v531 = vsel %vm514, %v494, 0
        %v534 = vsel %vm514, %v495, 0
        %v537 = vsel %vm514, %v496, 0
        %v540 = vsel %vm514, %v497, 0
        %v543 = vsel %vm514, %v498, 0
        %v546 = vsel %vm514, %v499, 0
        %v549 = vsel %vm514, %v500, 0
        %v552 = vsel %vm514, %v501, 0
        %v555 = vsel %vm514, %v502, 0
        %v558 = vsel %vm514, %v503, 0
        %v561 = vsel %vm514, %v504, 0
        %v564 = vsel %vm514, %v505, 0
        %566 = vmatpush.bf16.xpose.msra.mxu0 %v540
        %567 = vmatpush.bf16.xpose.msra.mxu0 %v537
        %568 = vmatpush.bf16.xpose.msra.mxu0 %v534
        %569 = vmatpush.bf16.xpose.msra.mxu0 %v531
        %570 = vmatpush.bf16.xpose.msra.mxu0 %v528
        %571 = vmatpush.bf16.xpose.msra.mxu0 %v525
        %572 = vmatpush.bf16.xpose.msra.mxu0 %v522
        %573 = vmatpush.bf16.xpose.msra.mxu0 %v519
        %574 = vmatmul.bf16.gmra.mxu0 %v516
        %v575 = vpop.f32.mrf.mxu0
        %v576 = vadd.f32 %v513, %v575
        %v577 = vpop.f32.mrf.mxu0
        %578 = vdwg.mxu0
        %579 = vmatpush.bf16.xpose.msra.mxu0 %v564
        %580 = vmatpush.bf16.xpose.msra.mxu0 %v561
        %581 = vmatpush.bf16.xpose.msra.mxu0 %v558
        %582 = vmatpush.bf16.xpose.msra.mxu0 %v555
        %583 = vmatpush.bf16.xpose.msra.mxu0 %v552
        %584 = vmatpush.bf16.xpose.msra.mxu0 %v549
        %585 = vmatpush.bf16.xpose.msra.mxu0 %v546
        %586 = vmatpush.bf16.xpose.msra.mxu0 %v543
        %587 = vmatmul.bf16.gmra.mxu0 %v516
        %v588 = vpop.f32.mrf.mxu0
        %v589 = vadd.f32 %v513, %v588
        %v590 = vpop.f32.mrf.mxu0
        %591 = vdwg.mxu0
        %v594 = vrot.slane %v589, 7
        %vm595 = vcmask 1040384
        %v596 = vsel %vm595, %v576, %v594
        %v598 = vlaneseq
        %vm599 = vcmp.ge.s32.totalorder %v598, 0
        %vm600 = vcmp.lt.s32.totalorder %v598, 256
        %vm601 = vmand %vm599, %vm600
        %602 = vst.msk [vmem:[%s232] sm:$0x3] %vm601, %v596
        %s603 = sand.u32 %s139, 1
        %s604 = scalar_lea.sflag [#allocation4], %s603
        %s605 = sand.u32 %s139, 1
        %s606 = smul.addr %s605, 2
        %s607 = scalar_lea.vmem [#allocation3], %s606
        // Predicated region
        $region41: #{tpu_custom_call.1} parent=39 // pred_check
          %p608 = pneg %p149
        $region42: #{tpu_custom_call.1} parent=39 // pred_check_branch
          %610 = sbr.rel (%p608) target = $region44
        $region43: #{tpu_custom_call.1} parent=39 // pred_region
          %s611 = smul.u32 2, %s21
          %s612 = ssub.s32 3, %s611
          %p613 = scmp.lt.s32.totalorder %s612, 2
          %s614 = scalar_select %p613, %s612, 2
          %s615 = ssub.s32 2, %s614
          %s616 = sshll.u32 %s615, 4
          %617 = vsyncadd %s604, %s616
          %p618 = scmp.ne.s32.totalorder 0, %s614
          %s619 = scalar_lea.hbm %s5, %s611
          %s620 = sshll.u32 %s614, 4
          %s621 = sshll.u32 %s607, 4
          %s622 = int_to_ptr.vmem [resolvable:$true] %s621
          %s623 = sshll.u32 %s619, 4
          %s624 = int_to_ptr.hbm [resolvable:$true] %s623
          %626 = dma.vmem_to_hbm [thread:$0]  (%p618), %s622, %s620, %s624, %s604
        $region44: #{tpu_custom_call.1} parent=39 // pred_fallthru
          _
      $region40: #{tpu_custom_call.1} parent=5 // pred_fallthru
        _
      %p627 = scmp.le.s32.totalorder 2, %s16
      // Predicated region
      $region45: #{tpu_custom_call.1} parent=5 // pred_check
        %p628 = pneg %p627
      $region46: #{tpu_custom_call.1} parent=5 // pred_check_branch
        %630 = sbr.rel (%p628) target = $region48
      $region47: #{tpu_custom_call.1} parent=5 // pred_region
        %s631 = ssub.s32 %s16, 2
        // Predicated region
        $region49: #{tpu_custom_call.1} parent=47 // pred_check
          %p632 = pneg %p155
        $region50: #{tpu_custom_call.1} parent=47 // pred_check_branch
          %634 = sbr.rel (%p632) target = $region52
        $region51: #{tpu_custom_call.1} parent=47 // pred_region
          %s635 = sand.u32 %s140, 1
          %s636 = scalar_lea.sflag [#allocation4], %s635
          %s637 = sand.u32 %s140, 1
          %s638 = smul.addr %s637, 2
          %s639 = scalar_lea.vmem [#allocation3], %s638
          %641 = dma.done %s636, 32
        $region52: #{tpu_custom_call.1} parent=47 // pred_fallthru
          _
      $region48: #{tpu_custom_call.1} parent=5 // pred_fallthru
        _
    $region6: #{tpu_custom_call.1} parent=1 // loop_footer
      %s20 = sadd.s32 1, %s16
    $region7: #{tpu_custom_call.1} parent=1 // loop_footer_branch
      %15 = sbr.rel target = $region3
    $region8: #{tpu_custom_call.1} parent=1 // loop_exit
      _
    %642 = vsyncpa [#allocation4], 1
    %s643 = scalar_lea.sflag [#allocation4], 1
    %644 = vsyncpa %s643, 1

</llo_original>
